<compile_context>
chip_gen: v6e
topology: v6e:2x2x1
jax: 0.10.0
libtpu: 0.0.40
codegen_flags: <defaults>
</compile_context>

<pallas_src>
import jax
import jax.numpy as jnp
from jax.experimental import pallas as pl
from jax.experimental.pallas import tpu as pltpu

_LANES = 128
_SUB = 8


def _make_kernel(tr, rows, n_vtiles, needs_mask):
    def kernel(p_ref, t_ref, o_ref, acc_p, acc_t, acc_pt):
        c = pl.program_id(1)   # voxel-chunk index (parallel)
        k = pl.program_id(2)   # voxel-tile index within chunk (reduction)

        @pl.when(k == 0)
        def _init():
            acc_p[...] = jnp.zeros_like(acc_p)
            acc_t[...] = jnp.zeros_like(acc_t)
            acc_pt[...] = jnp.zeros_like(acc_pt)

        p = p_ref[0].astype(jnp.float32)   # (tr, 128)
        t = t_ref[0].astype(jnp.float32)   # (tr, 128), int8 -> f32 cast on VPU

        if needs_mask:
            # Only compiled in when rows % tr != 0: zero the rows of the
            # ragged boundary tile that lie past the real voxel count.
            row0 = (c * n_vtiles + k) * tr
            rid = jax.lax.broadcasted_iota(jnp.int32, (tr, _LANES), 0)
            valid = (row0 + rid) < rows
            p = jnp.where(valid, p, 0.0)
            t = jnp.where(valid, t, 0.0)

        # Tree-reduce each tile down to one (8,128) vreg per quantity
        # (vreg-aligned VPU adds), then a single add into the accumulator.
        pg = p.reshape(tr // _SUB, _SUB, _LANES)
        tg = t.reshape(tr // _SUB, _SUB, _LANES)
        acc_p[...] += jnp.sum(pg, axis=0)
        acc_t[...] += jnp.sum(tg, axis=0)
        acc_pt[...] += jnp.sum(pg * tg, axis=0)

        @pl.when(k == n_vtiles - 1)
        def _finish():
            tp = jnp.sum(acc_pt[...])
            sp = jnp.sum(acc_p[...])
            st = jnp.sum(acc_t[...])
            # Pack (tp, sp, st) lane-dense into the (8,128) output block:
            # lane 0 -> tp, lane 1 -> sp, lanes 2.. -> st.
            lane = jax.lax.broadcasted_iota(jnp.int32, (_SUB, _LANES), 1)
            o_ref[0, 0] = jnp.where(lane == 0, tp,
                                    jnp.where(lane == 1, sp, st))

    return kernel


def tversky_loss(pred, target, *, block_rows=2048, max_chunks=2):
    """pred: (N, 1, D, H, W); target: (N, D, H, W) binary. Returns scalar f32."""
    pred = jnp.squeeze(pred, axis=1)            # (N, D, H, W)
    n = pred.shape[0]
    v = pred.shape[1] * pred.shape[2] * pred.shape[3]

    p2 = pred.reshape(n, v)
    # Binary mask -> int8 stream (4x fewer HBM bytes than f32).  Exact only
    # for hard 0/1 targets (the LiTS use case).
    t2 = target.reshape(n, v).astype(jnp.int8)

    # ---- tiling ----------------------------------------------------------
    # Pads only when unavoidable: v % 128 != 0 (need a lane-dense reshape) or
    # tiny inputs (< 32 rows, for the int8 (32,128) tile).  Real LiTS volumes
    # (H*W = 512*512) hit neither branch, so big tensors are read exactly
    # once; the ragged last tile is masked in-kernel instead of padded.
    rows = pl.cdiv(v, _LANES)
    rows = max(rows, 32)
    pad_v = rows * _LANES - v
    if pad_v:
        # TODO(synk): for large tensors with v % 128 != 0 this full-tensor
        # copy could be avoided with a masked 2-D path; not needed for LiTS.
        p2 = jnp.pad(p2, ((0, 0), (0, pad_v)))
        t2 = jnp.pad(t2, ((0, 0), (0, pad_v)))
    p3 = p2.reshape(n, rows, _LANES)
    t3 = t2.reshape(n, rows, _LANES)

    # Tile rows: multiple of 32 (int8 sublane packing), <= rows, ~1 MiB f32.
    tr = min(max(block_rows, 32) // 32 * 32, rows // 32 * 32)
    total_tiles = pl.cdiv(rows, tr)
    needs_mask = (rows % tr) != 0

    # v7x: parallel voxel-chunk axis so both TensorCores get work at batch 1.
    # Chunks must evenly split the tile count so every block window starts in
    # bounds (no index clamping).  No-op on single-TC v5e/v6e.
    n_chunks = 1
    for c in range(min(max_chunks, total_tiles), 0, -1):
        if total_tiles % c == 0:
            n_chunks = c
            break
    n_vtiles = total_tiles // n_chunks

    pred_bytes = jnp.dtype(p3.dtype).itemsize
    # 2 inputs x 2 pipeline buffers x tile, plus headroom for in-kernel temps.
    vmem_limit = int(2 * 2 * tr * _LANES * (pred_bytes + 1) + (12 << 20))

    out = pl.pallas_call(
        _make_kernel(tr, rows, n_vtiles, needs_mask),
        out_shape=jax.ShapeDtypeStruct((n, n_chunks, _SUB, _LANES), jnp.float32),
        grid_spec=pltpu.PrefetchScalarGridSpec(
            num_scalar_prefetch=0,
            grid=(n, n_chunks, n_vtiles),
            in_specs=[
                pl.BlockSpec((1, tr, _LANES),
                             lambda b, c, k: (b, c * n_vtiles + k, 0)),
                pl.BlockSpec((1, tr, _LANES),
                             lambda b, c, k: (b, c * n_vtiles + k, 0)),
            ],
            out_specs=pl.BlockSpec((1, 1, _SUB, _LANES),
                                   lambda b, c, k: (b, c, 0, 0)),
            scratch_shapes=[
                pltpu.VMEM((_SUB, _LANES), jnp.float32),
                pltpu.VMEM((_SUB, _LANES), jnp.float32),
                pltpu.VMEM((_SUB, _LANES), jnp.float32),
            ],
        ),
        compiler_params=pltpu.CompilerParams(
            dimension_semantics=("parallel", "parallel", "arbitrary"),
            vmem_limit_bytes=min(vmem_limit, 100 << 20),
        ),
    )(p3, t3)

    # Combine chunk partials and finish the dice math in plain JAX.
    tp = jnp.sum(out[:, :, 0, 0], axis=1)
    sp = jnp.sum(out[:, :, 0, 1], axis=1)
    st = jnp.sum(out[:, :, 0, 2], axis=1)
    # tp + 0.3*(sp - tp) + 0.7*(st - tp) + 1  ==  0.3*sp + 0.7*st + 1
    dice = tp / (0.3 * sp + 0.7 * st + 1.0)
    return jnp.clip(jnp.mean(1.0 - dice), 0.0, 2.0)


if __name__ == "__main__":
    key = jax.random.PRNGKey(0)
    k1, k2, k3, k4 = jax.random.split(key, 4)

    def reference(pred, target):
        p = jnp.squeeze(pred, axis=1)
        tp = jnp.sum(p * target, axis=(1, 2, 3))
        fp = jnp.sum(p * (1.0 - target), axis=(1, 2, 3))
        fn = jnp.sum((1.0 - p) * target, axis=(1, 2, 3))
        dice = tp / (tp + 0.3 * fp + 0.7 * fn + 1.0)
        return jnp.clip(jnp.mean(1.0 - dice), 0.0, 2.0)

    # Config A: ragged row count (40 rows, 32-row tiles) -> exercises the
    # int8 target stream, in-kernel masking of the boundary tile, and the
    # 2-chunk parallel axis.
    N, D, H, W = 2, 4, 32, 40
    pred = jax.nn.sigmoid(jax.random.normal(k1, (N, 1, D, H, W), jnp.float32))
    target = (jax.random.uniform(k2, (N, D, H, W)) > 0.5).astype(jnp.float32)
    loss = tversky_loss(pred, target)
    jax.block_until_ready(loss)
    ref = reference(pred, target)
    assert jnp.allclose(loss, ref, atol=1e-5, rtol=1e-4), (loss, ref)

    # Config B: tiny input -> single aligned tile, single chunk, no masking.
    N, D, H, W = 2, 2, 16, 16
    pred = jax.nn.sigmoid(jax.random.normal(k3, (N, 1, D, H, W), jnp.float32))
    target = (jax.random.uniform(k4, (N, D, H, W)) > 0.5).astype(jnp.float32)
    loss = tversky_loss(pred, target)
    jax.block_until_ready(loss)
    ref = reference(pred, target)
    assert jnp.allclose(loss, ref, atol=1e-5, rtol=1e-4), (loss, ref)

    print("KERNEL_OK")
</pallas_src>

<mosaic_0001>
module attributes {stable_mosaic.version = 11 : i64} {
  func.func @kernel(%arg0: i32, %arg1: i32, %arg2: i32, %arg3: memref<1x32x128xf32, #tpu.memory_space<vmem>>, %arg4: memref<1x32x128xi8, #tpu.memory_space<vmem>>, %arg5: memref<1x1x8x128xf32, #tpu.memory_space<vmem>>, %arg6: memref<8x128xf32, #tpu.memory_space<vmem>>, %arg7: memref<8x128xf32, #tpu.memory_space<vmem>>, %arg8: memref<8x128xf32, #tpu.memory_space<vmem>>) attributes {dimension_semantics = [#tpu.dimension_semantics<parallel>, #tpu.dimension_semantics<parallel>, #tpu.dimension_semantics<arbitrary>], iteration_bounds = array<i64: 2, 2, 1>, scalar_prefetch = 0 : i64, scratch_operands = 3 : i64, tpu.core_type = #tpu.core_type<tc>, window_params = [{transform_indices = @transform_0, window_bounds = array<i64: 1, 32, 128>}, {transform_indices = @transform_1, window_bounds = array<i64: 1, 32, 128>}, {transform_indices = @transform_2, window_bounds = array<i64: 1, 1, 8, 128>}]} {
    %c0_i32 = arith.constant 0 : i32
    %0 = arith.cmpi eq, %arg2, %c0_i32 : i32
    %1 = arith.extui %0 : i1 to i32
    %c0_i32_0 = arith.constant 0 : i32
    %2 = arith.cmpi ne, %1, %c0_i32_0 : i32
    scf.if %2 {
      %cst_24 = arith.constant 0.000000e+00 : f32
      %38 = vector.broadcast %cst_24 : f32 to vector<8x128xf32>
      %c0_25 = arith.constant 0 : index
      %c0_26 = arith.constant 0 : index
      %39 = vector.load %arg6[%c0_25, %c0_26] : memref<8x128xf32, #tpu.memory_space<vmem>>, vector<8x128xf32>
      tpu.vector_store %arg6[%c0_25, %c0_26], %38 {strides = array<i32>} : memref<8x128xf32, #tpu.memory_space<vmem>>, vector<8x128xf32>,
      %cst_27 = arith.constant 0.000000e+00 : f32
      %40 = vector.broadcast %cst_27 : f32 to vector<8x128xf32>
      %c0_28 = arith.constant 0 : index
      %c0_29 = arith.constant 0 : index
      %41 = vector.load %arg7[%c0_28, %c0_29] : memref<8x128xf32, #tpu.memory_space<vmem>>, vector<8x128xf32>
      tpu.vector_store %arg7[%c0_28, %c0_29], %40 {strides = array<i32>} : memref<8x128xf32, #tpu.memory_space<vmem>>, vector<8x128xf32>,
      %cst_30 = arith.constant 0.000000e+00 : f32
      %42 = vector.broadcast %cst_30 : f32 to vector<8x128xf32>
      %c0_31 = arith.constant 0 : index
      %c0_32 = arith.constant 0 : index
      %43 = vector.load %arg8[%c0_31, %c0_32] : memref<8x128xf32, #tpu.memory_space<vmem>>, vector<8x128xf32>
      tpu.vector_store %arg8[%c0_31, %c0_32], %42 {strides = array<i32>} : memref<8x128xf32, #tpu.memory_space<vmem>>, vector<8x128xf32>,
    } else {
    }
    %c0 = arith.constant 0 : index
    %c0_1 = arith.constant 0 : index
    %c0_2 = arith.constant 0 : index
    %3 = vector.load %arg3[%c0, %c0_1, %c0_2] : memref<1x32x128xf32, #tpu.memory_space<vmem>>, vector<1x32x128xf32>
    %4 = vector.shape_cast %3 : vector<1x32x128xf32> to vector<32x128xf32>
    %c0_3 = arith.constant 0 : index
    %c0_4 = arith.constant 0 : index
    %c0_5 = arith.constant 0 : index
    %5 = vector.load %arg4[%c0_3, %c0_4, %c0_5] : memref<1x32x128xi8, #tpu.memory_space<vmem>>, vector<1x32x128xi8>
    %6 = vector.shape_cast %5 : vector<1x32x128xi8> to vector<32x128xi8>
    %7 = arith.sitofp %6 : vector<32x128xi8> to vector<32x128xf32>
    %c1_i32 = arith.constant 1 : i32
    %8 = arith.muli %arg1, %c1_i32 : i32
    %9 = arith.addi %8, %arg2 : i32
    %c32_i32 = arith.constant 32 : i32
    %10 = arith.muli %9, %c32_i32 : i32
    %11 = tpu.iota {dimensions = array<i32: 0>} : vector<32x128xi32>
    %12 = vector.broadcast %10 : i32 to vector<32x128xi32>
    %13 = arith.addi %12, %11 : vector<32x128xi32>
    %c40_i32 = arith.constant 40 : i32
    %14 = vector.broadcast %c40_i32 : i32 to vector<32x128xi32>
    %15 = arith.cmpi slt, %13, %14 : vector<32x128xi32>
    %cst = arith.constant 0.000000e+00 : f32
    %16 = vector.broadcast %cst : f32 to vector<32x128xf32>
    %17 = arith.select %15, %4, %16 : vector<32x128xi1>, vector<32x128xf32>
    %cst_6 = arith.constant 0.000000e+00 : f32
    %18 = vector.broadcast %cst_6 : f32 to vector<32x128xf32>
    %19 = arith.select %15, %7, %18 : vector<32x128xi1>, vector<32x128xf32>
    %20 = vector.shape_cast %17 : vector<32x128xf32> to vector<4x8x128xf32>
    %21 = vector.shape_cast %19 : vector<32x128xf32> to vector<4x8x128xf32>
    %c0_7 = arith.constant 0 : index
    %c0_8 = arith.constant 0 : index
    %22 = vector.load %arg6[%c0_7, %c0_8] : memref<8x128xf32, #tpu.memory_space<vmem>>, vector<8x128xf32>
    %cst_9 = arith.constant dense<0.000000e+00> : vector<8x128xf32>
    %23 = vector.multi_reduction <add>, %20, %cst_9 [0] : vector<4x8x128xf32> to vector<8x128xf32>
    %24 = arith.addf %22, %23 : vector<8x128xf32>
    %c0_10 = arith.constant 0 : index
    %c0_11 = arith.constant 0 : index
    %25 = vector.load %arg6[%c0_10, %c0_11] : memref<8x128xf32, #tpu.memory_space<vmem>>, vector<8x128xf32>
    tpu.vector_store %arg6[%c0_10, %c0_11], %24 {strides = array<i32>} : memref<8x128xf32, #tpu.memory_space<vmem>>, vector<8x128xf32>,
    %c0_12 = arith.constant 0 : index
    %c0_13 = arith.constant 0 : index
    %26 = vector.load %arg7[%c0_12, %c0_13] : memref<8x128xf32, #tpu.memory_space<vmem>>, vector<8x128xf32>
    %cst_14 = arith.constant dense<0.000000e+00> : vector<8x128xf32>
    %27 = vector.multi_reduction <add>, %21, %cst_14 [0] : vector<4x8x128xf32> to vector<8x128xf32>
    %28 = arith.addf %26, %27 : vector<8x128xf32>
    %c0_15 = arith.constant 0 : index
    %c0_16 = arith.constant 0 : index
    %29 = vector.load %arg7[%c0_15, %c0_16] : memref<8x128xf32, #tpu.memory_space<vmem>>, vector<8x128xf32>
    tpu.vector_store %arg7[%c0_15, %c0_16], %28 {strides = array<i32>} : memref<8x128xf32, #tpu.memory_space<vmem>>, vector<8x128xf32>,
    %c0_17 = arith.constant 0 : index
    %c0_18 = arith.constant 0 : index
    %30 = vector.load %arg8[%c0_17, %c0_18] : memref<8x128xf32, #tpu.memory_space<vmem>>, vector<8x128xf32>
    %31 = arith.mulf %20, %21 : vector<4x8x128xf32>
    %cst_19 = arith.constant dense<0.000000e+00> : vector<8x128xf32>
    %32 = vector.multi_reduction <add>, %31, %cst_19 [0] : vector<4x8x128xf32> to vector<8x128xf32>
    %33 = arith.addf %30, %32 : vector<8x128xf32>
    %c0_20 = arith.constant 0 : index
    %c0_21 = arith.constant 0 : index
    %34 = vector.load %arg8[%c0_20, %c0_21] : memref<8x128xf32, #tpu.memory_space<vmem>>, vector<8x128xf32>
    tpu.vector_store %arg8[%c0_20, %c0_21], %33 {strides = array<i32>} : memref<8x128xf32, #tpu.memory_space<vmem>>, vector<8x128xf32>,
    %c0_i32_22 = arith.constant 0 : i32
    %35 = arith.cmpi eq, %arg2, %c0_i32_22 : i32
    %36 = arith.extui %35 : i1 to i32
    %c0_i32_23 = arith.constant 0 : i32
    %37 = arith.cmpi ne, %36, %c0_i32_23 : i32
    scf.if %37 {
      %c0_24 = arith.constant 0 : index
      %c0_25 = arith.constant 0 : index
      %38 = vector.load %arg8[%c0_24, %c0_25] : memref<8x128xf32, #tpu.memory_space<vmem>>, vector<8x128xf32>
      %39 = vector.shape_cast %38 : vector<8x128xf32> to vector<1x8x128xf32>
      %cst_26 = arith.constant dense<0.000000e+00> : vector<1xf32>
      %40 = vector.multi_reduction <add>, %39, %cst_26 [1, 2] : vector<1x8x128xf32> to vector<1xf32>
      %41 = vector.shape_cast %40 : vector<1xf32> to vector<1x1x1xf32>
      %42 = vector.extract %41[0, 0, 0] : f32 from vector<1x1x1xf32>
      %c0_27 = arith.constant 0 : index
      %c0_28 = arith.constant 0 : index
      %43 = vector.load %arg6[%c0_27, %c0_28] : memref<8x128xf32, #tpu.memory_space<vmem>>, vector<8x128xf32>
      %44 = vector.shape_cast %43 : vector<8x128xf32> to vector<1x8x128xf32>
      %cst_29 = arith.constant dense<0.000000e+00> : vector<1xf32>
      %45 = vector.multi_reduction <add>, %44, %cst_29 [1, 2] : vector<1x8x128xf32> to vector<1xf32>
      %46 = vector.shape_cast %45 : vector<1xf32> to vector<1x1x1xf32>
      %47 = vector.extract %46[0, 0, 0] : f32 from vector<1x1x1xf32>
      %c0_30 = arith.constant 0 : index
      %c0_31 = arith.constant 0 : index
      %48 = vector.load %arg7[%c0_30, %c0_31] : memref<8x128xf32, #tpu.memory_space<vmem>>, vector<8x128xf32>
      %49 = vector.shape_cast %48 : vector<8x128xf32> to vector<1x8x128xf32>
      %cst_32 = arith.constant dense<0.000000e+00> : vector<1xf32>
      %50 = vector.multi_reduction <add>, %49, %cst_32 [1, 2] : vector<1x8x128xf32> to vector<1xf32>
      %51 = vector.shape_cast %50 : vector<1xf32> to vector<1x1x1xf32>
      %52 = vector.extract %51[0, 0, 0] : f32 from vector<1x1x1xf32>
      %53 = tpu.iota {dimensions = array<i32: 1>} : vector<8x128xi32>
      %c0_i32_33 = arith.constant 0 : i32
      %54 = vector.broadcast %c0_i32_33 : i32 to vector<8x128xi32>
      %55 = arith.cmpi eq, %53, %54 : vector<8x128xi32>
      %c1_i32_34 = arith.constant 1 : i32
      %56 = vector.broadcast %c1_i32_34 : i32 to vector<8x128xi32>
      %57 = arith.cmpi eq, %53, %56 : vector<8x128xi32>
      %58 = vector.broadcast %47 : f32 to vector<8x128xf32>
      %59 = vector.broadcast %52 : f32 to vector<8x128xf32>
      %60 = arith.select %57, %58, %59 : vector<8x128xi1>, vector<8x128xf32>
      %61 = vector.broadcast %42 : f32 to vector<8x128xf32>
      %62 = arith.select %55, %61, %60 : vector<8x128xi1>, vector<8x128xf32>
      %c0_35 = arith.constant 0 : index
      %c0_36 = arith.constant 0 : index
      %c0_37 = arith.constant 0 : index
      %c0_38 = arith.constant 0 : index
      %63 = vector.load %arg5[%c0_35, %c0_36, %c0_37, %c0_38] : memref<1x1x8x128xf32, #tpu.memory_space<vmem>>, vector<1x1x8x128xf32>
      %64 = vector.shape_cast %63 : vector<1x1x8x128xf32> to vector<8x128xf32>
      %65 = vector.shape_cast %62 : vector<8x128xf32> to vector<1x1x8x128xf32>
      tpu.vector_store %arg5[%c0_35, %c0_36, %c0_37, %c0_38], %65 {strides = array<i32>} : memref<1x1x8x128xf32, #tpu.memory_space<vmem>>, vector<1x1x8x128xf32>,
    } else {
    }
    return
  }
  func.func @transform_0(%arg0: i32, %arg1: i32, %arg2: i32) -> (i32, i32, i32) {
    %c1_i32 = arith.constant 1 : i32
    %0 = arith.muli %arg1, %c1_i32 : i32
    %1 = arith.addi %0, %arg2 : i32
    %c0_i32 = arith.constant 0 : i32
    %c0_i32_0 = arith.constant 0 : i32
    return %arg0, %1, %c0_i32 : i32, i32, i32
  }
  func.func @transform_1(%arg0: i32, %arg1: i32, %arg2: i32) -> (i32, i32, i32) {
    %c1_i32 = arith.constant 1 : i32
    %0 = arith.muli %arg1, %c1_i32 : i32
    %1 = arith.addi %0, %arg2 : i32
    %c0_i32 = arith.constant 0 : i32
    %c0_i32_0 = arith.constant 0 : i32
    return %arg0, %1, %c0_i32 : i32, i32, i32
  }
  func.func @transform_2(%arg0: i32, %arg1: i32, %arg2: i32) -> (i32, i32, i32, i32) {
    %c0_i32 = arith.constant 0 : i32
    %c0_i32_0 = arith.constant 0 : i32
    %c0_i32_1 = arith.constant 0 : i32
    return %arg0, %arg1, %c0_i32, %c0_i32_0 : i32, i32, i32, i32
  }
}

</mosaic_0001>

<llo_original>
// kernel: tpu_custom_call.1
$region0: #{tpu_custom_call.1}
  #allocation0 [shape = 'u32[]', space=smem, size = 0x4, offset = 0x4, fixed_abs, tag = 'smem constant byte address 0x4 - core index']
  #allocation1 [shape = 'u32[144,128]{1,0:T(1,128)}', space=vmem, size = 0x12000, scoped, tag = 'internal scratch']
  #allocation2 [shape = 'f32[8,128]{1,0:T(8,128)}', space=vmem, size = 0x1000, scoped, tag = 'scratch operand']
  #allocation3 [shape = 'f32[8,128]{1,0:T(8,128)}', space=vmem, size = 0x1000, scoped, tag = 'scratch operand']
  #allocation4 [shape = 'f32[8,128]{1,0:T(8,128)}', space=vmem, size = 0x1000, scoped, tag = 'scratch operand']
  %s0 = inlined_call_operand.hbm [shape: f32[2,40,128], index: 0, kind: input, shape index: {}]
  %s1 = inlined_call_operand.hbm [shape: s8[2,40,128], index: 1, kind: input, shape index: {}]
  %s2 = inlined_call_operand.hbm [shape: f32[2,2,8,128], index: 2, kind: output, shape index: {}]
  %s3 = sld [smem:[#allocation0]]
  $region57: #{tpu_custom_call.1} parent=0
    _
  %s5 = ssub.s32 1, %s3
  %s6 = scalar_select 0, %s5, %s3
  $region1: #{tpu_custom_call.1} parent=0
    #allocation5 [shape = 'u8[32768]{0}', space=vmem, size = 0x8000, scoped, tag = 'input window, operand 0']
    #allocation6 [shape = 's32[2]{0}', space=sflag, size = 0x8, scoped, tag = 'scoped memory for tpu_custom_call.1']
    #allocation7 [shape = 's32[2]{0}', space=sflag, size = 0x8, scoped, tag = 'scoped memory for tpu_custom_call.1']
    #allocation8 [shape = 'u8[8192]{0}', space=vmem, size = 0x2000, scoped, tag = 'input window, operand 1']
    #allocation9 [shape = 's32[2]{0}', space=sflag, size = 0x8, scoped, tag = 'scoped memory for tpu_custom_call.1']
    #allocation10 [shape = 'u8[8192]{0}', space=vmem, size = 0x2000, scoped, tag = 'output window, operand 0']
    %7 = vsyncpa [#allocation6], 0
    %s8 = scalar_lea.sflag [#allocation6], 1
    %9 = vsyncpa %s8, 0
    %10 = vsyncpa [#allocation9], 0
    %s11 = scalar_lea.sflag [#allocation9], 1
    %12 = vsyncpa %s11, 0
    %13 = vsyncpa [#allocation7], 0
    %s14 = scalar_lea.sflag [#allocation7], 1
    %15 = vsyncpa %s14, 0
    loop: start=0, step=1, limit=6
    $region2: #{tpu_custom_call.1} parent=1 // loop_pre_header
      _
    $region3: #{tpu_custom_call.1} parent=1 // loop_header
      %s17 = sphi 0, %s21
      %p18 = scmp.ge.s32.totalorder %s17, 6
      %s24 = sphi 0, %s43
      %s25 = sphi 0, %s39
      %s26 = sphi 0, %s35
      %s27 = sphi 0, %s24
      %s28 = sphi 0, %s25
      %s29 = sphi 0, %s26
      %s30 = sphi 0, %s27
      %s31 = sphi 0, %s28
      %s32 = sphi 0, %s29
      %s50 = sphi 0, %s52
      %s53 = sphi 0, %s50
      %s54 = sphi 0, %s53
      %s70 = sphi 0, %s54
      %s80 = sphi 0, %s82
      %s83 = sphi 0, %s80
      %s84 = sphi 0, %s83
      %s100 = sphi 0, %s84
      %s108 = sphi 0, %s110
      %s111 = sphi 0, %s108
      %s112 = sphi 0, %s111
      %s128 = sphi 0, %s112
    $region4: #{tpu_custom_call.1} parent=1 // loop_header_branch
      %20 = sbr.rel (%p18) target = $region8
    $region5: #{tpu_custom_call.1} parent=1 // loop_body
      %s22 = ssub.s32 %s17, 1
      %s23 = ssub.s32 %s17, 2
      %s33 = sadd.s32 1, %s26
      %p34 = scmp.ge.s32.totalorder %s33, 1
      %s35 = scalar_select %p34, 0, %s33
      %s36 = sadd.s32 1, %s25
      %s37 = scalar_select %p34, %s36, %s25
      %p38 = scmp.ge.s32.totalorder %s37, 2
      %s39 = scalar_select %p38, 0, %s37
      %s40 = sadd.s32 1, %s24
      %s41 = scalar_select %p38, %s40, %s24
      %p42 = scmp.ge.s32.totalorder %s41, 2
      %s43 = scalar_select %p42, 0, %s41
      %s44 = sadd.s32 %s25, %s26
      %s45 = sadd.s32 %s39, %s35
      %s46 = ssub.s32 %s24, %s43
      %s47 = ssub.s32 %s44, %s45
      %s48 = sor.u32 %s46, %s47
      %p49 = scmp.eq.s32.totalorder %s48, 0
      %s51 = sadd.s32 %s50, 1
      %s52 = scalar_select %p49, %s50, %s51
      %p55 = pneg %p49
      %p56 = scmp.eq.s32.totalorder %s17, 3
      %p57 = por %p55, %p56
      %p58 = scmp.ne.s32.totalorder %s50, %s53
      %p59 = scmp.eq.s32.totalorder %s17, 0
      %p60 = por %p58, %p59
      %p61 = scmp.ne.s32.totalorder %s50, %s53
      %p62 = scmp.eq.s32.totalorder %s22, 3
      %p63 = por %p61, %p62
      %p64 = scmp.ne.s32.totalorder %s53, %s54
      %p65 = scmp.eq.s32.totalorder %s22, 0
      %p66 = por %p64, %p65
      %p67 = scmp.ne.s32.totalorder %s53, %s54
      %p68 = scmp.eq.s32.totalorder %s23, 3
      %p69 = por %p67, %p68
      %p71 = scmp.ne.s32.totalorder %s54, %s70
      %p72 = scmp.eq.s32.totalorder %s23, 0
      %p73 = por %p71, %p72
      %s74 = sadd.s32 %s25, %s26
      %s75 = sadd.s32 %s39, %s35
      %s76 = ssub.s32 %s24, %s43
      %s77 = ssub.s32 %s74, %s75
      %s78 = sor.u32 %s76, %s77
      %p79 = scmp.eq.s32.totalorder %s78, 0
      %s81 = sadd.s32 %s80, 1
      %s82 = scalar_select %p79, %s80, %s81
      %p85 = pneg %p79
      %p86 = scmp.eq.s32.totalorder %s17, 3
      %p87 = por %p85, %p86
      %p88 = scmp.ne.s32.totalorder %s80, %s83
      %p89 = scmp.eq.s32.totalorder %s17, 0
      %p90 = por %p88, %p89
      %p91 = scmp.ne.s32.totalorder %s80, %s83
      %p92 = scmp.eq.s32.totalorder %s22, 3
      %p93 = por %p91, %p92
      %p94 = scmp.ne.s32.totalorder %s83, %s84
      %p95 = scmp.eq.s32.totalorder %s22, 0
      %p96 = por %p94, %p95
      %p97 = scmp.ne.s32.totalorder %s83, %s84
      %p98 = scmp.eq.s32.totalorder %s23, 3
      %p99 = por %p97, %p98
      %p101 = scmp.ne.s32.totalorder %s84, %s100
      %p102 = scmp.eq.s32.totalorder %s23, 0
      %p103 = por %p101, %p102
      %s104 = ssub.s32 %s24, %s43
      %s105 = ssub.s32 %s25, %s39
      %s106 = sor.u32 %s104, %s105
      %p107 = scmp.eq.s32.totalorder %s106, 0
      %s109 = sadd.s32 %s108, 1
      %s110 = scalar_select %p107, %s108, %s109
      %p113 = pneg %p107
      %p114 = scmp.eq.s32.totalorder %s17, 3
      %p115 = por %p113, %p114
      %p116 = scmp.ne.s32.totalorder %s108, %s111
      %p117 = scmp.eq.s32.totalorder %s17, 0
      %p118 = por %p116, %p117
      %p119 = scmp.ne.s32.totalorder %s108, %s111
      %p120 = scmp.eq.s32.totalorder %s22, 3
      %p121 = por %p119, %p120
      %p122 = scmp.ne.s32.totalorder %s111, %s112
      %p123 = scmp.eq.s32.totalorder %s22, 0
      %p124 = por %p122, %p123
      %p125 = scmp.ne.s32.totalorder %s111, %s112
      %p126 = scmp.eq.s32.totalorder %s23, 3
      %p127 = por %p125, %p126
      %p129 = scmp.ne.s32.totalorder %s112, %s128
      %p130 = scmp.eq.s32.totalorder %s23, 0
      %p131 = por %p129, %p130
      %p132 = scmp.le.s32.totalorder 1, %s17
      %p133 = scmp.lt.s32.totalorder %s17, 5
      %p134 = pnand %p132, %p133
      %p135 = pneg %p134
      // Predicated region
      $region9: #{tpu_custom_call.1} parent=5 // pred_check
        _
      $region10: #{tpu_custom_call.1} parent=5 // pred_check_branch
        %137 = sbr.rel (%p134) target = $region12
      $region11: #{tpu_custom_call.1} parent=5 // pred_region
        %s138 = ssub.s32 %s17, 1
      $region12: #{tpu_custom_call.1} parent=5 // pred_fallthru
        _
      %p139 = scmp.lt.s32.totalorder %s17, 4
      // Predicated region
      $region13: #{tpu_custom_call.1} parent=5 // pred_check
        %p140 = pneg %p139
      $region14: #{tpu_custom_call.1} parent=5 // pred_check_branch
        %142 = sbr.rel (%p140) target = $region16
      $region15: #{tpu_custom_call.1} parent=5 // pred_region
        // Predicated region
        $region17: #{tpu_custom_call.1} parent=15 // pred_check
          %p143 = pneg %p60
        $region18: #{tpu_custom_call.1} parent=15 // pred_check_branch
          %145 = sbr.rel (%p143) target = $region20
        $region19: #{tpu_custom_call.1} parent=15 // pred_region
          %s146 = sand.u32 %s50, 1
          %s147 = scalar_lea.sflag [#allocation6], %s146
          %s148 = sand.u32 %s50, 1
          %s149 = smul.addr %s148, 32
          %s150 = scalar_lea.vmem [#allocation5], %s149
          %s151 = sadd.s32 %s25, %s26
          %s152 = smul.u32 4, %s151
          %s153 = ssub.s32 5, %s152
          %p154 = scmp.lt.s32.totalorder %s153, 4
          %s155 = scalar_select %p154, %s153, 4
          %s156 = smul.u32 128, %s155
          %s158 = ssub.s32 512, %s156
          %159 = vsyncadd %s147, %s158
          %p160 = scmp.ne.s32.totalorder 0, %s156
          %s161 = smul.addr %s24, 5
          %s162 = sadd.s32 %s152, %s161
          %s163 = smul.addr %s162, 128
          %s164 = scalar_lea.hbm %s0, %s163
          %s165 = smul.u32 8, %s155
          %s166 = sshll.u32 %s150, 4
          %s167 = int_to_ptr.vmem [resolvable:$true] %s166
          %s168 = sshll.u32 %s165, 4
          %172 = dma.hbm_to_vmem [thread:$0]  (%p160), %s164, %s168, %s167, %s147, 128, 128, 8
        $region20: #{tpu_custom_call.1} parent=15 // pred_fallthru
          _
        // Predicated region
        $region21: #{tpu_custom_call.1} parent=15 // pred_check
          %p173 = pneg %p90
        $region22: #{tpu_custom_call.1} parent=15 // pred_check_branch
          %175 = sbr.rel (%p173) target = $region24
        $region23: #{tpu_custom_call.1} parent=15 // pred_region
          %s176 = sand.u32 %s80, 1
          %s177 = scalar_lea.sflag [#allocation9], %s176
          %s178 = sand.u32 %s80, 1
          %s179 = smul.addr %s178, 8
          %s180 = scalar_lea.vmem [#allocation8], %s179
          %s181 = sadd.s32 %s25, %s26
          %s182 = smul.u32 4, %s181
          %s183 = ssub.s32 5, %s182
          %p184 = scmp.lt.s32.totalorder %s183, 4
          %s185 = scalar_select %p184, %s183, 4
          %s186 = smul.u32 32, %s185
          %s188 = ssub.s32 128, %s186
          %189 = vsyncadd %s177, %s188
          %p190 = scmp.ne.s32.totalorder 0, %s186
          %s191 = smul.addr %s24, 5
          %s192 = sadd.s32 %s182, %s191
          %s193 = smul.addr %s192, 32
          %s194 = scalar_lea.hbm %s1, %s193
          %s195 = smul.u32 2, %s185
          %s196 = sshll.u32 %s180, 4
          %s197 = int_to_ptr.vmem [resolvable:$true] %s196
          %s198 = sshll.u32 %s195, 4
          %202 = dma.hbm_to_vmem [thread:$0]  (%p190), %s194, %s198, %s197, %s177, 32, 32, 2
        $region24: #{tpu_custom_call.1} parent=15 // pred_fallthru
          _
      $region16: #{tpu_custom_call.1} parent=5 // pred_fallthru
        _
      %p203 = scmp.le.s32.totalorder 1, %s17
      %p204 = scmp.lt.s32.totalorder %s17, 5
      %p205 = pnand %p203, %p204
      %p206 = pneg %p205
      // Predicated region
      $region25: #{tpu_custom_call.1} parent=5 // pred_check
        _
      $region26: #{tpu_custom_call.1} parent=5 // pred_check_branch
        %208 = sbr.rel (%p205) target = $region28
      $region27: #{tpu_custom_call.1} parent=5 // pred_region
        %s209 = ssub.s32 %s17, 1
        %s210 = sand.u32 %s53, 1
        %s211 = scalar_lea.sflag [#allocation6], %s210
        %s212 = sand.u32 %s53, 1
        %s213 = smul.addr %s212, 32
        %s214 = scalar_lea.vmem [#allocation5], %s213
        // Predicated region
        $region29: #{tpu_custom_call.1} parent=27 // pred_check
          %p215 = pneg %p66
        $region30: #{tpu_custom_call.1} parent=27 // pred_check_branch
          %217 = sbr.rel (%p215) target = $region32
        $region31: #{tpu_custom_call.1} parent=27 // pred_region
          %218 = dma.done %s211, 512
        $region32: #{tpu_custom_call.1} parent=27 // pred_fallthru
          _
        %s219 = sand.u32 %s83, 1
        %s220 = scalar_lea.sflag [#allocation9], %s219
        %s221 = sand.u32 %s83, 1
        %s222 = smul.addr %s221, 8
        %s223 = scalar_lea.vmem [#allocation8], %s222
        // Predicated region
        $region33: #{tpu_custom_call.1} parent=27 // pred_check
          %p224 = pneg %p96
        $region34: #{tpu_custom_call.1} parent=27 // pred_check_branch
          %226 = sbr.rel (%p224) target = $region36
        $region35: #{tpu_custom_call.1} parent=27 // pred_region
          %227 = dma.done %s220, 128
        $region36: #{tpu_custom_call.1} parent=27 // pred_fallthru
          _
        %s228 = sand.u32 %s53, 1
        %s229 = scalar_lea.sflag [#allocation6], %s228
        %s230 = sand.u32 %s53, 1
        %s231 = smul.addr %s230, 32
        %s232 = scalar_lea.vmem [#allocation5], %s231
        %p233 = pneg %p66
        %p234 = pneg %p63
        %s235 = sand.u32 %s83, 1
        %s236 = scalar_lea.sflag [#allocation9], %s235
        %s237 = sand.u32 %s83, 1
        %s238 = smul.addr %s237, 8
        %s239 = scalar_lea.vmem [#allocation8], %s238
        %p240 = pneg %p96
        %p241 = pneg %p93
        %p242 = pneg %p124
        %p243 = pneg %p121
        %s244 = sand.u32 %s111, 1
        %s245 = scalar_lea.sflag [#allocation7], %s244
        %s246 = sand.u32 %s111, 1
        %s247 = smul.addr %s246, 8
        %s248 = scalar_lea.vmem [#allocation10], %s247
        %s249 = sadd.s32 %s28, %s29
        %s250 = smul.u32 4, %s249
        %s251 = ssub.s32 5, %s250
        %p252 = scmp.lt.s32.totalorder %s251, 4
        %s253 = scalar_select %p252, %s251, 4
        %s254 = smul.u32 128, %s253
        %s255 = sadd.s32 %s28, %s29
        %s256 = smul.u32 4, %s255
        %s257 = ssub.s32 5, %s256
        %p258 = scmp.lt.s32.totalorder %s257, 4
        %s259 = scalar_select %p258, %s257, 4
        %s260 = smul.u32 32, %s259
        %p261 = scmp.eq.s32.totalorder %s29, 0
        // Predicated region
        $region37: #{tpu_custom_call.1} parent=27 // pred_check
          %p262 = pneg %p261
        $region38: #{tpu_custom_call.1} parent=27 // pred_check_branch
          %264 = sbr.rel (%p262) target = $region40
        $region39: #{tpu_custom_call.1} parent=27 // pred_region
          %265 = vst [vmem:[#allocation2] sm:$0xff] 0.0
          %266 = vst [vmem:[#allocation3] sm:$0xff] 0.0
          %267 = vst [vmem:[#allocation4] sm:$0xff] 0.0
        $region40: #{tpu_custom_call.1} parent=27 // pred_fallthru
          _
        %v268 = vld [vmem:[%s214] sm:$0xff]
        %v269 = vld [vmem:[%s214 + $0x8] sm:$0xff]
        %v270 = vld [vmem:[%s214 + $0x10] sm:$0xff]
        %v271 = vld [vmem:[%s214 + $0x18] sm:$0xff]
        %v272 = vld [vmem:[%s223] sm:$0x3]
        %v273 = vld [vmem:[%s223 + $0x2] sm:$0x3]
        %v274 = vld [vmem:[%s223 + $0x4] sm:$0x3]
        %v275 = vld [vmem:[%s223 + $0x6] sm:$0x3]
        %v276 = vunpack.c.0.s8 %v272
        %v277 = vunpack.c.0.s8 %v273
        %v278 = vunpack.c.0.s8 %v274
        %v279 = vunpack.c.0.s8 %v275
        %v280 = vcvt.s32.f32 %v276
        %v281 = vcvt.s32.f32 %v277
        %v282 = vcvt.s32.f32 %v278
        %v283 = vcvt.s32.f32 %v279
        %s284 = sadd.s32 %s28, %s29
        %s285 = smul.u32 %s284, 32
        %v286 = vlaneseq
        %v287 = vshrl.u32 %v286, 7
        %v288 = vadd.s32 %v287, 8
        %v289 = vadd.s32 %v287, 16
        %v290 = vadd.s32 %v287, 24
        %v291 = vstv %s285
        %v292 = vadd.s32 %v291, %v287
        %v293 = vadd.s32 %v291, %v288
        %v294 = vadd.s32 %v291, %v289
        %v295 = vadd.s32 %v291, %v290
        %vm296 = vcmp.lt.s32.totalorder %v292, 40
        %vm297 = vcmp.lt.s32.totalorder %v293, 40
        %vm298 = vcmp.lt.s32.totalorder %v294, 40
        %vm299 = vcmp.lt.s32.totalorder %v295, 40
        %v300 = vsel %vm296, %v268, 0.0
        %v301 = vsel %vm297, %v269, 0.0
        %v302 = vsel %vm298, %v270, 0.0
        %v303 = vsel %vm299, %v271, 0.0
        %v304 = vsel %vm296, %v280, 0.0
        %v305 = vsel %vm297, %v281, 0.0
        %v306 = vsel %vm298, %v282, 0.0
        %v307 = vsel %vm299, %v283, 0.0
        %v308 = vld [vmem:[#allocation2] sm:$0xff]
        %v309 = vadd.f32 %v300, %v301
        %v310 = vadd.f32 %v309, %v302
        %v311 = vadd.f32 %v310, %v303
        %v312 = vadd.f32 %v308, %v311
        %313 = vst [vmem:[#allocation2] sm:$0xff] %v312
        %v314 = vld [vmem:[#allocation3] sm:$0xff]
        %v315 = vadd.f32 %v304, %v305
        %v316 = vadd.f32 %v315, %v306
        %v317 = vadd.f32 %v316, %v307
        %v318 = vadd.f32 %v314, %v317
        %319 = vst [vmem:[#allocation3] sm:$0xff] %v318
        %v320 = vld [vmem:[#allocation4] sm:$0xff]
        %v321 = vmul.f32 %v300, %v304
        %v322 = vmul.f32 %v301, %v305
        %v323 = vmul.f32 %v302, %v306
        %v324 = vmul.f32 %v303, %v307
        %v325 = vadd.f32 %v321, %v322
        %v326 = vadd.f32 %v325, %v323
        %v327 = vadd.f32 %v326, %v324
        %v328 = vadd.f32 %v320, %v327
        %329 = vst [vmem:[#allocation4] sm:$0xff] %v328
        // Predicated region
        $region41: #{tpu_custom_call.1} parent=27 // pred_check
          %p330 = pneg %p261
        $region42: #{tpu_custom_call.1} parent=27 // pred_check_branch
          %332 = sbr.rel (%p330) target = $region44
        $region43: #{tpu_custom_call.1} parent=27 // pred_region
          %v333 = vld [vmem:[#allocation4] sm:$0xff]
          %334 = vadd.xlane.f32.xlu0 %v333
          %v335 = vpop.xlane.xlu0 %334
          %v336 = vrot.slane %v335, 4
          %v337 = vadd.f32 %v335, %v336
          %v338 = vrot.slane %v337, 2
          %v339 = vadd.f32 %v337, %v338
          %v340 = vrot.slane %v339, 1
          %v341 = vadd.f32 %v339, %v340
          %s342 = vtos %v341
          %v343 = vld [vmem:[#allocation2] sm:$0xff]
          %344 = vadd.xlane.f32.xlu0 %v343
          %v345 = vpop.xlane.xlu0 %344
          %v346 = vrot.slane %v345, 4
          %v347 = vadd.f32 %v345, %v346
          %v348 = vrot.slane %v347, 2
          %v349 = vadd.f32 %v347, %v348
          %v350 = vrot.slane %v349, 1
          %v351 = vadd.f32 %v349, %v350
          %s352 = vtos %v351
          %v353 = vld [vmem:[#allocation3] sm:$0xff]
          %354 = vadd.xlane.f32.xlu0 %v353
          %v355 = vpop.xlane.xlu0 %354
          %v356 = vrot.slane %v355, 4
          %v357 = vadd.f32 %v355, %v356
          %v358 = vrot.slane %v357, 2
          %v359 = vadd.f32 %v357, %v358
          %v360 = vrot.slane %v359, 1
          %v361 = vadd.f32 %v359, %v360
          %s362 = vtos %v361
          %v363 = vlaneseq
          %v364 = vand.u32 %v363, 127
          %vm365 = vcmp.eq.s32.totalorder %v364, 0
          %vm366 = vcmp.eq.s32.totalorder %v364, 1
          %v367 = vstv %s352
          %v368 = vstv %s362
          %v369 = vsel %vm366, %v367, %v368
          %v370 = vstv %s342
          %v371 = vsel %vm365, %v370, %v369
          %372 = vst [vmem:[%s248] sm:$0xff] %v371
        $region44: #{tpu_custom_call.1} parent=27 // pred_fallthru
          _
        %s373 = sand.u32 %s111, 1
        %s374 = scalar_lea.sflag [#allocation7], %s373
        %s375 = sand.u32 %s111, 1
        %s376 = smul.addr %s375, 8
        %s377 = scalar_lea.vmem [#allocation10], %s376
        // Predicated region
        $region45: #{tpu_custom_call.1} parent=27 // pred_check
          %p378 = pneg %p121
        $region46: #{tpu_custom_call.1} parent=27 // pred_check_branch
          %380 = sbr.rel (%p378) target = $region48
        $region47: #{tpu_custom_call.1} parent=27 // pred_region
          %s382 = ssub.s32 128, 128
          %383 = vsyncadd %s374, %s382
          %s384 = smul.addr %s27, 2
          %s385 = sadd.s32 %s28, %s384
          %s386 = smul.addr %s385, 128
          %s387 = scalar_lea.hbm %s2, %s386
          %s389 = sshll.u32 %s377, 4
          %s390 = int_to_ptr.vmem [resolvable:$true] %s389
          %392 = dma.vmem_to_hbm [thread:$0]  %s390, 128, %s387, %s374
        $region48: #{tpu_custom_call.1} parent=27 // pred_fallthru
          _
      $region28: #{tpu_custom_call.1} parent=5 // pred_fallthru
        _
      %p393 = scmp.le.s32.totalorder 2, %s17
      // Predicated region
      $region49: #{tpu_custom_call.1} parent=5 // pred_check
        %p394 = pneg %p393
      $region50: #{tpu_custom_call.1} parent=5 // pred_check_branch
        %396 = sbr.rel (%p394) target = $region52
      $region51: #{tpu_custom_call.1} parent=5 // pred_region
        %s397 = ssub.s32 %s17, 2
        // Predicated region
        $region53: #{tpu_custom_call.1} parent=51 // pred_check
          %p398 = pneg %p127
        $region54: #{tpu_custom_call.1} parent=51 // pred_check_branch
          %400 = sbr.rel (%p398) target = $region56
        $region55: #{tpu_custom_call.1} parent=51 // pred_region
          %s401 = sand.u32 %s112, 1
          %s402 = scalar_lea.sflag [#allocation7], %s401
          %s403 = sand.u32 %s112, 1
          %s404 = smul.addr %s403, 8
          %s405 = scalar_lea.vmem [#allocation10], %s404
          %406 = dma.done %s402, 128
        $region56: #{tpu_custom_call.1} parent=51 // pred_fallthru
          _
      $region52: #{tpu_custom_call.1} parent=5 // pred_fallthru
        _
    $region6: #{tpu_custom_call.1} parent=1 // loop_footer
      %s21 = sadd.s32 1, %s17
    $region7: #{tpu_custom_call.1} parent=1 // loop_footer_branch
      %16 = sbr.rel target = $region3
    $region8: #{tpu_custom_call.1} parent=1 // loop_exit
      _
    %407 = vsyncpa [#allocation6], 1
    %s408 = scalar_lea.sflag [#allocation6], 1
    %409 = vsyncpa %s408, 1
    %410 = vsyncpa [#allocation9], 1
    %s411 = scalar_lea.sflag [#allocation9], 1
    %412 = vsyncpa %s411, 1
    %413 = vsyncpa [#allocation7], 1
    %s414 = scalar_lea.sflag [#allocation7], 1
    %415 = vsyncpa %s414, 1

</llo_original>
